<compile_context>
chip_gen: v7x
topology: tpu7x:2x2x1
jax: 0.10.0
libtpu: 0.0.40
codegen_flags: <defaults>
</compile_context>

<pallas_src>
import jax
import jax.numpy as jnp
from jax.experimental import pallas as pl
from jax.experimental.pallas import tpu as pltpu

_LANE = 128
_HEAD_ROWS = 8   # fused head rows: 0..1 action logits, 2 critic value, 3..7 zero pad
_K_PAD = 8       # layer-1 contraction (4 states + 1 bias) padded to one f32 sublane tile


def _round_up(x, m):
    return ((x + m - 1) // m) * m


def _cdiv(a, b):
    return -(-a // b)


def a2c_kernel(xt_ref, w1t_ref, wht_ref, bh_ref, out_ref):
    """One batch tile (batch on lanes).

    xt_ref : (8, TB)  rows 0..3 = state features, row 4 = 1.0 (bias), rows 5..7 = 0
    w1t_ref: (H, 8)   cols 0..3 = W1^T, col 4 = b1, cols 5..7 = 0
    wht_ref: (8, H)   rows 0..1 = W_action^T, row 2 = W_critic^T, rows 3..7 = 0
    bh_ref : (8, 1)   rows 0..1 = b_action, row 2 = b_critic, rows 3..7 = 0
    out_ref: (8, TB)  rows 0..1 = softmax probs, row 2 = value, rows 3..7 = 0
    """
    # Layer 1 (+ folded bias) on the MXU, ReLU on the VPU.
    h = jnp.dot(w1t_ref[...], xt_ref[...], preferred_element_type=jnp.float32)
    h = jnp.maximum(h, 0.0)                                   # (H, TB)

    # Fused action + critic heads: one small MXU matmul.
    # Invariant: rows 3..7 of wht/bh are zero => heads rows 3..7 are exactly 0.
    heads = jnp.dot(wht_ref[...], h, preferred_element_type=jnp.float32)
    heads = heads + bh_ref[...]                               # (8, TB)

    # Numerically-stable symmetric 2-class softmax on dense (1, TB) rows.
    l0 = heads[0:1, :]
    l1 = heads[1:2, :]
    d = l1 - l0
    e = jnp.exp(-jnp.abs(d))          # in (0, 1]; never overflows (EUP)
    big = 1.0 / (1.0 + e)             # larger probability
    small = e * big                   # smaller probability, full relative precision
    l0_wins = d <= 0.0
    p0 = jnp.where(l0_wins, big, small)
    p1 = jnp.where(l0_wins, small, big)

    # Assemble the slab: overwrite rows 0/1 with probs; row 2 (value) and the
    # already-zero rows 3..7 come straight from `heads`.  Two selects total
    # over only TB/128 vregs, then one unmasked (8, TB) store.
    row = jax.lax.broadcasted_iota(jnp.int32, heads.shape, 0)
    out_ref[...] = jnp.where(row == 0, p0, jnp.where(row == 1, p1, heads))


def _choose_tiling(batch):
    """Pick (TB, num_tiles).  TB is a multiple of 128 (lane-dense batch).
    Batches big enough to split get an even tile count (balances v7x's two
    TensorCores); tiny batches use a single tile (no grid-step overhead)."""
    tb_cap = 4096  # keeps per-tile h (H, TB) f32 + double-buffered I/O to a few MiB
    b_lanes = _round_up(max(batch, 1), _LANE)
    num_tiles = 1 if b_lanes <= 2 * _LANE else 2
    tb = _round_up(_cdiv(max(batch, 1), num_tiles), _LANE)
    while tb > tb_cap:
        num_tiles += 2
        tb = _round_up(_cdiv(batch, num_tiles), _LANE)
    return tb, num_tiles


@jax.jit
def a2c_forward(x, w1, b1, w2, b2, w3, b3):
    """Returns (action_scores (B, num_actions), state_values (B, 1))."""
    B, num_states = x.shape
    hidden = w1.shape[1]
    num_actions = w2.shape[1]
    assert num_actions == 2, "kernel uses the 2-class closed-form softmax"
    assert num_states + 1 <= _K_PAD and num_actions + 1 <= _HEAD_ROWS

    TB, num_tiles = _choose_tiling(B)
    b_pad = TB * num_tiles

    # x^T augmented with a ones-row (folds b1 into the layer-1 matmul),
    # zero-padded to (8, b_pad).
    x_aug = jnp.concatenate([x, jnp.ones((B, 1), x.dtype)], axis=1)
    x_aug = jnp.pad(x_aug, ((0, b_pad - B), (0, _K_PAD - (num_states + 1))))
    xt = x_aug.T.astype(jnp.float32)                              # (8, b_pad)

    # W1^T with b1 folded in as an extra column, zero-padded to (H, 8).
    w1t = jnp.concatenate([w1.T, b1.reshape(hidden, 1)], axis=1)
    w1t = jnp.pad(w1t, ((0, 0), (0, _K_PAD - (num_states + 1))))
    w1t = w1t.astype(jnp.float32)

    # Fused heads: rows 0..1 = action head, row 2 = critic head, rows 3..7 = 0.
    wht = jnp.zeros((_HEAD_ROWS, hidden), jnp.float32)
    wht = wht.at[:num_actions, :].set(w2.T)
    wht = wht.at[num_actions, :].set(w3.reshape(hidden))
    bh = jnp.zeros((_HEAD_ROWS, 1), jnp.float32)
    bh = bh.at[:num_actions, 0].set(b2.reshape(num_actions))
    bh = bh.at[num_actions, 0].set(b3.reshape(()))

    slab = pl.pallas_call(
        a2c_kernel,
        grid=(num_tiles,),
        in_specs=[
            pl.BlockSpec((_K_PAD, TB), lambda i: (0, i)),          # x^T tile
            pl.BlockSpec((hidden, _K_PAD), lambda i: (0, 0)),      # W1^T | b1
            pl.BlockSpec((_HEAD_ROWS, hidden), lambda i: (0, 0)),  # fused head W
            pl.BlockSpec((_HEAD_ROWS, 1), lambda i: (0, 0)),       # fused head b
        ],
        out_specs=pl.BlockSpec((_HEAD_ROWS, TB), lambda i: (0, i)),
        out_shape=jax.ShapeDtypeStruct((_HEAD_ROWS, b_pad), jnp.float32),
        compiler_params=pltpu.CompilerParams(
            dimension_semantics=("parallel",)),
    )(xt, w1t, wht, bh)

    action_scores = slab[:num_actions, :B].T                    # (B, 2)
    state_values = slab[num_actions:num_actions + 1, :B].T      # (B, 1)
    return action_scores, state_values


def init_params(key, num_states=4, num_actions=2, hidden=128):
    """Deterministic PyTorch-style (uniform fan-in) init, stored as (in, out)."""
    ks = jax.random.split(key, 6)

    def linear(kw, kb, fan_in, fan_out):
        bound = 1.0 / jnp.sqrt(fan_in)
        w = jax.random.uniform(kw, (fan_in, fan_out), jnp.float32, -bound, bound)
        b = jax.random.uniform(kb, (1, fan_out), jnp.float32, -bound, bound)
        return w, b

    w1, b1 = linear(ks[0], ks[1], num_states, hidden)
    w2, b2 = linear(ks[2], ks[3], hidden, num_actions)
    w3, b3 = linear(ks[4], ks[5], hidden, 1)
    return w1, b1, w2, b2, w3, b3


if __name__ == "__main__":
    key = jax.random.PRNGKey(0)
    k_x, k_p, k_x2 = jax.random.split(key, 3)

    num_states, num_actions, hidden = 4, 2, 128
    params = init_params(k_p, num_states, num_actions, hidden)
    w1, b1, w2, b2, w3, b3 = params

    hi = jax.lax.Precision.HIGHEST

    def reference(xin):
        h = jnp.maximum(jnp.dot(xin, w1, precision=hi) + b1, 0.0)
        probs = jax.nn.softmax(jnp.dot(h, w2, precision=hi) + b2, axis=-1)
        vals = jnp.dot(h, w3, precision=hi) + b3
        return probs, vals

    # Small CartPole-sized batch (single tile).
    batch = 2
    x = jax.random.normal(k_x, (batch, num_states), dtype=jnp.float32)
    action_scores, state_values = a2c_forward(x, *params)
    jax.block_until_ready((action_scores, state_values))

    probs_ref, vals_ref = reference(x)
    assert action_scores.shape == (batch, num_actions)
    assert state_values.shape == (batch, 1)
    assert jnp.allclose(action_scores, probs_ref, atol=1e-5)
    assert jnp.allclose(state_values, vals_ref, atol=1e-5)
    assert jnp.allclose(jnp.sum(action_scores, axis=-1), 1.0, atol=1e-5)

    # Larger batch: exercises the multi-tile, pipelined, parallel grid.
    batch2 = 1100
    x2 = jax.random.normal(k_x2, (batch2, num_states), dtype=jnp.float32)
    probs2, vals2 = a2c_forward(x2, *params)
    jax.block_until_ready((probs2, vals2))
    probs2_ref, vals2_ref = reference(x2)
    assert probs2.shape == (batch2, num_actions)
    assert vals2.shape == (batch2, 1)
    assert jnp.allclose(probs2, probs2_ref, atol=1e-5)
    assert jnp.allclose(vals2, vals2_ref, atol=1e-5)

    print("KERNEL_OK")
</pallas_src>

<mosaic_0001>
module attributes {stable_mosaic.version = 11 : i64} {
  func.func @a2c_kernel(%arg0: i32, %arg1: memref<8x128xf32, #tpu.memory_space<vmem>>, %arg2: memref<128x8xf32, #tpu.memory_space<vmem>>, %arg3: memref<8x128xf32, #tpu.memory_space<vmem>>, %arg4: memref<8x1xf32, #tpu.memory_space<vmem>>, %arg5: memref<8x128xf32, #tpu.memory_space<vmem>>) attributes {dimension_semantics = [#tpu.dimension_semantics<parallel>], iteration_bounds = array<i64: 1>, scalar_prefetch = 0 : i64, scratch_operands = 0 : i64, tpu.core_type = #tpu.core_type<tc>, window_params = [{transform_indices = @transform_0, window_bounds = array<i64: 8, 128>}, {pipeline_mode = #tpu.pipeline_mode<synchronous>, transform_indices = @transform_1, window_bounds = array<i64: 128, 8>}, {pipeline_mode = #tpu.pipeline_mode<synchronous>, transform_indices = @transform_2, window_bounds = array<i64: 8, 128>}, {pipeline_mode = #tpu.pipeline_mode<synchronous>, transform_indices = @transform_3, window_bounds = array<i64: 8, 1>}, {transform_indices = @transform_4, window_bounds = array<i64: 8, 128>}]} {
    %c0 = arith.constant 0 : index
    %c0_0 = arith.constant 0 : index
    %0 = vector.load %arg2[%c0, %c0_0] : memref<128x8xf32, #tpu.memory_space<vmem>>, vector<128x8xf32>
    %c0_1 = arith.constant 0 : index
    %c0_2 = arith.constant 0 : index
    %1 = vector.load %arg1[%c0_1, %c0_2] : memref<8x128xf32, #tpu.memory_space<vmem>>, vector<8x128xf32>
    %cst = arith.constant dense<0.000000e+00> : vector<128x128xf32>
    %2 = tpu.matmul %0, %1, %cst {dimension_numbers = #tpu.dot_dimension_numbers<[1], [0], [0], [1], [0, 0, 1, 1], [], []>} : vector<128x8xf32>, vector<8x128xf32>, vector<128x128xf32> -> vector<128x128xf32>
    %cst_3 = arith.constant 0.000000e+00 : f32
    %3 = vector.broadcast %cst_3 : f32 to vector<128x128xf32>
    %4 = arith.maximumf %2, %3 : vector<128x128xf32>
    %c0_4 = arith.constant 0 : index
    %c0_5 = arith.constant 0 : index
    %5 = vector.load %arg3[%c0_4, %c0_5] : memref<8x128xf32, #tpu.memory_space<vmem>>, vector<8x128xf32>
    %cst_6 = arith.constant dense<0.000000e+00> : vector<8x128xf32>
    %6 = tpu.matmul %5, %4, %cst_6 {dimension_numbers = #tpu.dot_dimension_numbers<[1], [0], [0], [1], [0, 0, 1, 1], [], []>} : vector<8x128xf32>, vector<128x128xf32>, vector<8x128xf32> -> vector<8x128xf32>
    %c0_7 = arith.constant 0 : index
    %c0_8 = arith.constant 0 : index
    %7 = vector.load %arg4[%c0_7, %c0_8] : memref<8x1xf32, #tpu.memory_space<vmem>>, vector<8x1xf32>
    %8 = vector.broadcast %7 : vector<8x1xf32> to vector<8x128xf32>
    %9 = arith.addf %6, %8 : vector<8x128xf32>
    %10 = vector.extract_strided_slice %9 {offsets = [0, 0], sizes = [1, 128], strides = [1, 1]} : vector<8x128xf32> to vector<1x128xf32>
    %11 = vector.extract_strided_slice %9 {offsets = [1, 0], sizes = [1, 128], strides = [1, 1]} : vector<8x128xf32> to vector<1x128xf32>
    %12 = arith.subf %11, %10 : vector<1x128xf32>
    %13 = math.absf %12 : vector<1x128xf32>
    %cst_9 = arith.constant 0.000000e+00 : f32
    %14 = vector.broadcast %cst_9 : f32 to vector<1x128xf32>
    %15 = arith.subf %14, %13 : vector<1x128xf32>
    %16 = math.exp %15 : vector<1x128xf32>
    %cst_10 = arith.constant 1.000000e+00 : f32
    %17 = vector.broadcast %cst_10 : f32 to vector<1x128xf32>
    %18 = arith.addf %17, %16 : vector<1x128xf32>
    %cst_11 = arith.constant 1.000000e+00 : f32
    %19 = vector.broadcast %cst_11 : f32 to vector<1x128xf32>
    %20 = arith.divf %19, %18 : vector<1x128xf32>
    %21 = arith.mulf %16, %20 : vector<1x128xf32>
    %cst_12 = arith.constant 0.000000e+00 : f32
    %22 = vector.broadcast %cst_12 : f32 to vector<1x128xf32>
    %23 = arith.cmpf ole, %12, %22 : vector<1x128xf32>
    %24 = arith.select %23, %20, %21 : vector<1x128xi1>, vector<1x128xf32>
    %25 = arith.select %23, %21, %20 : vector<1x128xi1>, vector<1x128xf32>
    %26 = tpu.iota {dimensions = array<i32: 0>} : vector<8x128xi32>
    %c0_i32 = arith.constant 0 : i32
    %27 = vector.broadcast %c0_i32 : i32 to vector<8x128xi32>
    %28 = arith.cmpi eq, %26, %27 : vector<8x128xi32>
    %c1_i32 = arith.constant 1 : i32
    %29 = vector.broadcast %c1_i32 : i32 to vector<8x128xi32>
    %30 = arith.cmpi eq, %26, %29 : vector<8x128xi32>
    %31 = vector.shape_cast %25 : vector<1x128xf32> to vector<1x128xf32>
    %32 = vector.broadcast %31 : vector<1x128xf32> to vector<8x128xf32>
    %33 = arith.select %30, %32, %9 : vector<8x128xi1>, vector<8x128xf32>
    %34 = vector.shape_cast %24 : vector<1x128xf32> to vector<1x128xf32>
    %35 = vector.broadcast %34 : vector<1x128xf32> to vector<8x128xf32>
    %36 = arith.select %28, %35, %33 : vector<8x128xi1>, vector<8x128xf32>
    %c0_13 = arith.constant 0 : index
    %c0_14 = arith.constant 0 : index
    %37 = vector.load %arg5[%c0_13, %c0_14] : memref<8x128xf32, #tpu.memory_space<vmem>>, vector<8x128xf32>
    tpu.vector_store %arg5[%c0_13, %c0_14], %36 {strides = array<i32>} : memref<8x128xf32, #tpu.memory_space<vmem>>, vector<8x128xf32>,
    return
  }
  func.func @transform_0(%arg0: i32) -> (i32, i32) {
    %c0_i32 = arith.constant 0 : i32
    %c0_i32_0 = arith.constant 0 : i32
    return %c0_i32, %arg0 : i32, i32
  }
  func.func @transform_1(%arg0: i32) -> (i32, i32) {
    %c0_i32 = arith.constant 0 : i32
    %c0_i32_0 = arith.constant 0 : i32
    %c0_i32_1 = arith.constant 0 : i32
    return %c0_i32, %c0_i32_0 : i32, i32
  }
  func.func @transform_2(%arg0: i32) -> (i32, i32) {
    %c0_i32 = arith.constant 0 : i32
    %c0_i32_0 = arith.constant 0 : i32
    %c0_i32_1 = arith.constant 0 : i32
    return %c0_i32, %c0_i32_0 : i32, i32
  }
  func.func @transform_3(%arg0: i32) -> (i32, i32) {
    %c0_i32 = arith.constant 0 : i32
    %c0_i32_0 = arith.constant 0 : i32
    %c0_i32_1 = arith.constant 0 : i32
    return %c0_i32, %c0_i32_0 : i32, i32
  }
  func.func @transform_4(%arg0: i32) -> (i32, i32) {
    %c0_i32 = arith.constant 0 : i32
    %c0_i32_0 = arith.constant 0 : i32
    return %c0_i32, %arg0 : i32, i32
  }
}

</mosaic_0001>

<llo_original>
// kernel: a2c_forward.1
$region0: #{a2c_forward.1}
  #allocation0 [shape = 'u32[]', space=smem, size = 0x4, offset = 0x4, fixed_abs, tag = 'smem constant byte address 0x4 - core index']
  #allocation1 [shape = 'u32[144,128]{1,0:T(1,128)}', space=vmem, size = 0x12000, scoped, tag = 'internal scratch']
  %s0 = inlined_call_operand.vmem [shape: f32[8,128], index: 0, kind: input, shape index: {}]
  %s1 = inlined_call_operand.vmem [shape: f32[128,8], index: 1, kind: input, shape index: {}]
  %s2 = inlined_call_operand.vmem [shape: f32[8,128], index: 2, kind: input, shape index: {}]
  %s3 = inlined_call_operand.vmem [shape: f32[8,1], index: 3, kind: input, shape index: {}]
  %s4 = inlined_call_operand.vmem [shape: f32[8,128], index: 4, kind: output, shape index: {}]
  %s5 = sld [smem:[#allocation0]]
  $region26: #{a2c_forward.1} parent=0
    _
  %s7 = ssub.s32 1, %s5
  %s8 = scalar_select 0, %s7, %s5
  // Predicated region
  $region2: #{a2c_forward.1} parent=0 // pred_check
    _
  $region3: #{a2c_forward.1} parent=0 // pred_check_branch
    %10 = sbr.rel (0) target = $region5
  $region4: #{a2c_forward.1} parent=0 // pred_region
    _
  $region5: #{a2c_forward.1} parent=0 // pred_fallthru
    _
  // Predicated region
  $region6: #{a2c_forward.1} parent=0 // pred_check
    _
  $region7: #{a2c_forward.1} parent=0 // pred_check_branch
    %12 = sbr.rel (0) target = $region9
  $region8: #{a2c_forward.1} parent=0 // pred_region
    _
  $region9: #{a2c_forward.1} parent=0 // pred_fallthru
    _
  // Predicated region
  $region10: #{a2c_forward.1} parent=0 // pred_check
    _
  $region11: #{a2c_forward.1} parent=0 // pred_check_branch
    %14 = sbr.rel (0) target = $region13
  $region12: #{a2c_forward.1} parent=0 // pred_region
    _
  $region13: #{a2c_forward.1} parent=0 // pred_fallthru
    _
  // Predicated region
  $region14: #{a2c_forward.1} parent=0 // pred_check
    _
  $region15: #{a2c_forward.1} parent=0 // pred_check_branch
    %16 = sbr.rel (0) target = $region17
  $region16: #{a2c_forward.1} parent=0 // pred_region
    _
  $region17: #{a2c_forward.1} parent=0 // pred_fallthru
    _
  %v17 = vld [vmem:[%s1] sm:$0xff]
  %v18 = vld [vmem:[%s1 + $0x8] sm:$0xff]
  %v19 = vld [vmem:[%s1 + $0x10] sm:$0xff]
  %v20 = vld [vmem:[%s1 + $0x18] sm:$0xff]
  %v21 = vld [vmem:[%s1 + $0x20] sm:$0xff]
  %v22 = vld [vmem:[%s1 + $0x28] sm:$0xff]
  %v23 = vld [vmem:[%s1 + $0x30] sm:$0xff]
  %v24 = vld [vmem:[%s1 + $0x38] sm:$0xff]
  %v25 = vld [vmem:[%s1 + $0x40] sm:$0xff]
  %v26 = vld [vmem:[%s1 + $0x48] sm:$0xff]
  %v27 = vld [vmem:[%s1 + $0x50] sm:$0xff]
  %v28 = vld [vmem:[%s1 + $0x58] sm:$0xff]
  %v29 = vld [vmem:[%s1 + $0x60] sm:$0xff]
  %v30 = vld [vmem:[%s1 + $0x68] sm:$0xff]
  %v31 = vld [vmem:[%s1 + $0x70] sm:$0xff]
  %v32 = vld [vmem:[%s1 + $0x78] sm:$0xff]
  %v33 = vld [vmem:[%s0] sm:$0xff]
  %vm34 = vcmask 64512
  %v36 = vsel %vm34, %v17, 0
  %v39 = vsel %vm34, %v18, 0
  %v42 = vsel %vm34, %v19, 0
  %v45 = vsel %vm34, %v20, 0
  %v48 = vsel %vm34, %v21, 0
  %v51 = vsel %vm34, %v22, 0
  %v54 = vsel %vm34, %v23, 0
  %v57 = vsel %vm34, %v24, 0
  %v60 = vsel %vm34, %v25, 0
  %v63 = vsel %vm34, %v26, 0
  %v66 = vsel %vm34, %v27, 0
  %v69 = vsel %vm34, %v28, 0
  %v72 = vsel %vm34, %v29, 0
  %v75 = vsel %vm34, %v30, 0
  %v78 = vsel %vm34, %v31, 0
  %v81 = vsel %vm34, %v32, 0
  %83 = vmatprep.subr.mxu0 0.0
  %84 = vmatpush1.msra.mxu0 %v33
  %85 = vmatprep.subr.mxu0 0.0
  %86 = vmatpush1.msra.mxu0 0.0
  %87 = vmatprep.subr.mxu0 0.0
  %88 = vmatpush1.msra.mxu0 0.0
  %89 = vmatprep.subr.mxu0 0.0
  %90 = vmatpush1.msra.mxu0 0.0
  %91 = vmatprep.subr.mxu0 0.0
  %92 = vmatpush1.msra.mxu0 0.0
  %93 = vmatprep.subr.mxu0 0.0
  %94 = vmatpush1.msra.mxu0 0.0
  %95 = vmatprep.subr.mxu0 0.0
  %96 = vmatpush1.msra.mxu0 0.0
  %97 = vmatprep.subr.mxu0 0.0
  %98 = vmatpush1.msra.mxu0 0.0
  %99 = vmatprep.subr.mxu0 0.0
  %100 = vmatpush1.msra.mxu0 0.0
  %101 = vmatprep.subr.mxu0 0.0
  %102 = vmatpush1.msra.mxu0 0.0
  %103 = vmatprep.subr.mxu0 0.0
  %104 = vmatpush1.msra.mxu0 0.0
  %105 = vmatprep.subr.mxu0 0.0
  %106 = vmatpush1.msra.mxu0 0.0
  %107 = vmatprep.subr.mxu0 0.0
  %108 = vmatpush1.msra.mxu0 0.0
  %109 = vmatprep.subr.mxu0 0.0
  %110 = vmatpush1.msra.mxu0 0.0
  %111 = vmatprep.subr.mxu0 0.0
  %112 = vmatpush1.msra.mxu0 0.0
  %113 = vmatprep.subr.mxu0 0.0
  %114 = vmatpush1.msra.mxu0 0.0
  %115 = vmatprep.subr.mxu0 0.0
  %116 = vmatpush1.msra.mxu0 0.0
  %117 = vmatprep.subr.mxu0 0.0
  %118 = vmatpush1.msra.mxu0 0.0
  %119 = vmatprep.subr.mxu0 0.0
  %120 = vmatpush1.msra.mxu0 0.0
  %121 = vmatprep.subr.mxu0 0.0
  %122 = vmatpush1.msra.mxu0 0.0
  %123 = vmatprep.subr.mxu0 0.0
  %124 = vmatpush1.msra.mxu0 0.0
  %125 = vmatprep.subr.mxu0 0.0
  %126 = vmatpush1.msra.mxu0 0.0
  %127 = vmatprep.subr.mxu0 0.0
  %128 = vmatpush1.msra.mxu0 0.0
  %129 = vmatprep.subr.mxu0 0.0
  %130 = vmatpush1.msra.mxu0 0.0
  %131 = vmatprep.subr.mxu0 0.0
  %132 = vmatpush1.msra.mxu0 0.0
  %133 = vmatprep.subr.mxu0 0.0
  %134 = vmatpush1.msra.mxu0 0.0
  %135 = vmatprep.subr.mxu0 0.0
  %136 = vmatpush1.msra.mxu0 0.0
  %137 = vmatprep.subr.mxu0 0.0
  %138 = vmatpush1.msra.mxu0 0.0
  %139 = vmatprep.subr.mxu0 0.0
  %140 = vmatpush1.msra.mxu0 0.0
  %141 = vmatprep.subr.mxu0 0.0
  %142 = vmatpush1.msra.mxu0 0.0
  %143 = vmatprep.subr.mxu0 0.0
  %144 = vmatpush1.msra.mxu0 0.0
  %145 = vmatprep.subr.mxu0 0.0
  %146 = vmatpush1.msra.mxu0 0.0
  %147 = vmatprep.mubr.f32.mxu0 0.0
  %148 = vmatmul.mubr.f32.gmra.mrb[0].mxu0 %v36
  %v149 = vpop.f32.mrb[0].mxu0
  %v150 = vadd.f32 0.0, %v149
  %v151 = vpop.f32.mrb[0].mxu0
  %152 = vmatprep.mubr.f32.mxu0 0.0
  %153 = vmatmul.mubr.f32.gmra.mrb[0].mxu0 %v39
  %v154 = vpop.f32.mrb[0].mxu0
  %v155 = vadd.f32 0.0, %v154
  %v156 = vpop.f32.mrb[0].mxu0
  %157 = vmatprep.mubr.f32.mxu0 0.0
  %158 = vmatmul.mubr.f32.gmra.mrb[0].mxu0 %v42
  %v159 = vpop.f32.mrb[0].mxu0
  %v160 = vadd.f32 0.0, %v159
  %v161 = vpop.f32.mrb[0].mxu0
  %162 = vmatprep.mubr.f32.mxu0 0.0
  %163 = vmatmul.mubr.f32.gmra.mrb[0].mxu0 %v45
  %v164 = vpop.f32.mrb[0].mxu0
  %v165 = vadd.f32 0.0, %v164
  %v166 = vpop.f32.mrb[0].mxu0
  %167 = vmatprep.mubr.f32.mxu0 0.0
  %168 = vmatmul.mubr.f32.gmra.mrb[0].mxu0 %v48
  %v169 = vpop.f32.mrb[0].mxu0
  %v170 = vadd.f32 0.0, %v169
  %v171 = vpop.f32.mrb[0].mxu0
  %172 = vmatprep.mubr.f32.mxu0 0.0
  %173 = vmatmul.mubr.f32.gmra.mrb[0].mxu0 %v51
  %v174 = vpop.f32.mrb[0].mxu0
  %v175 = vadd.f32 0.0, %v174
  %v176 = vpop.f32.mrb[0].mxu0
  %177 = vmatprep.mubr.f32.mxu0 0.0
  %178 = vmatmul.mubr.f32.gmra.mrb[0].mxu0 %v54
  %v179 = vpop.f32.mrb[0].mxu0
  %v180 = vadd.f32 0.0, %v179
  %v181 = vpop.f32.mrb[0].mxu0
  %182 = vmatprep.mubr.f32.mxu0 0.0
  %183 = vmatmul.mubr.f32.gmra.mrb[0].mxu0 %v57
  %v184 = vpop.f32.mrb[0].mxu0
  %v185 = vadd.f32 0.0, %v184
  %v186 = vpop.f32.mrb[0].mxu0
  %187 = vmatprep.mubr.f32.mxu0 0.0
  %188 = vmatmul.mubr.f32.gmra.mrb[0].mxu0 %v60
  %v189 = vpop.f32.mrb[0].mxu0
  %v190 = vadd.f32 0.0, %v189
  %v191 = vpop.f32.mrb[0].mxu0
  %192 = vmatprep.mubr.f32.mxu0 0.0
  %193 = vmatmul.mubr.f32.gmra.mrb[0].mxu0 %v63
  %v194 = vpop.f32.mrb[0].mxu0
  %v195 = vadd.f32 0.0, %v194
  %v196 = vpop.f32.mrb[0].mxu0
  %197 = vmatprep.mubr.f32.mxu0 0.0
  %198 = vmatmul.mubr.f32.gmra.mrb[0].mxu0 %v66
  %v199 = vpop.f32.mrb[0].mxu0
  %v200 = vadd.f32 0.0, %v199
  %v201 = vpop.f32.mrb[0].mxu0
  %202 = vmatprep.mubr.f32.mxu0 0.0
  %203 = vmatmul.mubr.f32.gmra.mrb[0].mxu0 %v69
  %v204 = vpop.f32.mrb[0].mxu0
  %v205 = vadd.f32 0.0, %v204
  %v206 = vpop.f32.mrb[0].mxu0
  %207 = vmatprep.mubr.f32.mxu0 0.0
  %208 = vmatmul.mubr.f32.gmra.mrb[0].mxu0 %v72
  %v209 = vpop.f32.mrb[0].mxu0
  %v210 = vadd.f32 0.0, %v209
  %v211 = vpop.f32.mrb[0].mxu0
  %212 = vmatprep.mubr.f32.mxu0 0.0
  %213 = vmatmul.mubr.f32.gmra.mrb[0].mxu0 %v75
  %v214 = vpop.f32.mrb[0].mxu0
  %v215 = vadd.f32 0.0, %v214
  %v216 = vpop.f32.mrb[0].mxu0
  %217 = vmatprep.mubr.f32.mxu0 0.0
  %218 = vmatmul.mubr.f32.gmra.mrb[0].mxu0 %v78
  %v219 = vpop.f32.mrb[0].mxu0
  %v220 = vadd.f32 0.0, %v219
  %v221 = vpop.f32.mrb[0].mxu0
  %222 = vmatprep.mubr.f32.mxu0 0.0
  %223 = vmatmul.mubr.f32.gmra.mrb[0].mxu0 %v81
  %v224 = vpop.f32.mrb[0].mxu0
  %v225 = vadd.f32 0.0, %v224
  %v226 = vpop.f32.mrb[0].mxu0
  %227 = vdwg.mxu0
  %v228 = vmax.f32 %v150, 0.0
  %v229 = vmax.f32 %v155, 0.0
  %v230 = vmax.f32 %v160, 0.0
  %v231 = vmax.f32 %v165, 0.0
  %v232 = vmax.f32 %v170, 0.0
  %v233 = vmax.f32 %v175, 0.0
  %v234 = vmax.f32 %v180, 0.0
  %v235 = vmax.f32 %v185, 0.0
  %v236 = vmax.f32 %v190, 0.0
  %v237 = vmax.f32 %v195, 0.0
  %v238 = vmax.f32 %v200, 0.0
  %v239 = vmax.f32 %v205, 0.0
  %v240 = vmax.f32 %v210, 0.0
  %v241 = vmax.f32 %v215, 0.0
  %v242 = vmax.f32 %v220, 0.0
  %v243 = vmax.f32 %v225, 0.0
  %v244 = vld [vmem:[%s2] sm:$0xff]
  %v245 = vld [vmem:[%s3] sm:$0xff]
  %247 = vset.pattern.permute.xlu0 0
  %248 = vperm.xlu0 %247, %v245
  %v249 = vpop.permute.xlu0 %248
  %251 = vmatprep.subr.mxu0 0.0
  %252 = vmatpush1.msra.mxu0 %v228
  %253 = vmatprep.subr.mxu0 0.0
  %254 = vmatpush1.msra.mxu0 %v229
  %255 = vmatprep.subr.mxu0 0.0
  %256 = vmatpush1.msra.mxu0 %v230
  %257 = vmatprep.subr.mxu0 0.0
  %258 = vmatpush1.msra.mxu0 %v231
  %259 = vmatprep.subr.mxu0 0.0
  %260 = vmatpush1.msra.mxu0 %v232
  %261 = vmatprep.subr.mxu0 0.0
  %262 = vmatpush1.msra.mxu0 %v233
  %263 = vmatprep.subr.mxu0 0.0
  %264 = vmatpush1.msra.mxu0 %v234
  %265 = vmatprep.subr.mxu0 0.0
  %266 = vmatpush1.msra.mxu0 %v235
  %267 = vmatprep.subr.mxu0 0.0
  %268 = vmatpush1.msra.mxu0 %v236
  %269 = vmatprep.subr.mxu0 0.0
  %270 = vmatpush1.msra.mxu0 %v237
  %271 = vmatprep.subr.mxu0 0.0
  %272 = vmatpush1.msra.mxu0 %v238
  %273 = vmatprep.subr.mxu0 0.0
  %274 = vmatpush1.msra.mxu0 %v239
  %275 = vmatprep.subr.mxu0 0.0
  %276 = vmatpush1.msra.mxu0 %v240
  %277 = vmatprep.subr.mxu0 0.0
  %278 = vmatpush1.msra.mxu0 %v241
  %279 = vmatprep.subr.mxu0 0.0
  %280 = vmatpush1.msra.mxu0 %v242
  %281 = vmatprep.subr.mxu0 0.0
  %282 = vmatpush1.msra.mxu0 %v243
  %283 = vmatprep.subr.mxu0 0.0
  %284 = vmatpush1.msra.mxu0 0.0
  %285 = vmatprep.subr.mxu0 0.0
  %286 = vmatpush1.msra.mxu0 0.0
  %287 = vmatprep.subr.mxu0 0.0
  %288 = vmatpush1.msra.mxu0 0.0
  %289 = vmatprep.subr.mxu0 0.0
  %290 = vmatpush1.msra.mxu0 0.0
  %291 = vmatprep.subr.mxu0 0.0
  %292 = vmatpush1.msra.mxu0 0.0
  %293 = vmatprep.subr.mxu0 0.0
  %294 = vmatpush1.msra.mxu0 0.0
  %295 = vmatprep.subr.mxu0 0.0
  %296 = vmatpush1.msra.mxu0 0.0
  %297 = vmatprep.subr.mxu0 0.0
  %298 = vmatpush1.msra.mxu0 0.0
  %299 = vmatprep.subr.mxu0 0.0
  %300 = vmatpush1.msra.mxu0 0.0
  %301 = vmatprep.subr.mxu0 0.0
  %302 = vmatpush1.msra.mxu0 0.0
  %303 = vmatprep.subr.mxu0 0.0
  %304 = vmatpush1.msra.mxu0 0.0
  %305 = vmatprep.subr.mxu0 0.0
  %306 = vmatpush1.msra.mxu0 0.0
  %307 = vmatprep.subr.mxu0 0.0
  %308 = vmatpush1.msra.mxu0 0.0
  %309 = vmatprep.subr.mxu0 0.0
  %310 = vmatpush1.msra.mxu0 0.0
  %311 = vmatprep.subr.mxu0 0.0
  %312 = vmatpush1.msra.mxu0 0.0
  %313 = vmatprep.subr.mxu0 0.0
  %314 = vmatpush1.msra.mxu0 0.0
  %315 = vmatprep.mubr.f32.mxu0 0.0
  %316 = vmatmul.mubr.f32.gmra.mrb[0].mxu0 %v244
  %v317 = vpop.f32.mrb[0].mxu0
  %v318 = vadd.f32 %v249, %v317
  %v319 = vpop.f32.mrb[0].mxu0
  %320 = vdwg.mxu0
  %v322 = vrot.slane %v318, 7
  %v324 = vsub.f32 %v318, %v322
  %v325 = vand.u32 2147483647, %v324
  %v326 = vsub.f32 0.0, %v325
  %v327 = vmul.f32 %v326, 1.442695
  %v328 = vpow.pop %v327
  %v329 = vadd.f32 %v328, 1.0
  %v330 = vrcp.pop %v329
  %v331 = vmul.f32 1.0, %v330
  %v332 = vmul.f32 %v328, %v331
  %vm333 = vcmp.le.f32.partialorder %v324, 0.0
  %v334 = vsel %vm333, %v331, %v332
  %v335 = vsel %vm333, %v332, %v331
  %v336 = vlaneseq
  %v337 = vshrl.u32 %v336, 7
  %vm338 = vcmp.eq.s32.totalorder %v337, 0
  %vm339 = vcmp.eq.s32.totalorder %v337, 1
  %v340 = vlaneseq
  %v341 = vshrl.u32 %v340, 7
  %v342 = vsub.s32 1, %v341
  %v343 = vrot.slane %v335, %v342
  %v344 = vsel %vm339, %v343, %v318
  %v345 = vlaneseq
  %v346 = vshrl.u32 %v345, 7
  %v347 = vsub.s32 1, %v346
  %v348 = vrot.slane %v334, %v347
  %v349 = vsel %vm338, %v348, %v344
  %350 = vst [vmem:[%s4] sm:$0xff] %v349
  // Predicated region
  $region18: #{a2c_forward.1} parent=0 // pred_check
    _
  $region19: #{a2c_forward.1} parent=0 // pred_check_branch
    %352 = sbr.rel (0) target = $region21
  $region20: #{a2c_forward.1} parent=0 // pred_region
    _
  $region21: #{a2c_forward.1} parent=0 // pred_fallthru
    _
  // Predicated region
  $region22: #{a2c_forward.1} parent=0 // pred_check
    _
  $region23: #{a2c_forward.1} parent=0 // pred_check_branch
    %354 = sbr.rel (0) target = $region25
  $region24: #{a2c_forward.1} parent=0 // pred_region
    _
  $region25: #{a2c_forward.1} parent=0 // pred_fallthru
    _

</llo_original>
